<compile_context>
chip_gen: v6e
topology: v6e:2x2x1
jax: 0.10.0
libtpu: 0.0.40
codegen_flags: <defaults>
</compile_context>

<pallas_src>
import functools

import jax
import jax.numpy as jnp
import numpy as np
from jax.experimental import pallas as pl
from jax.experimental.pallas import tpu as pltpu

SELU_ALPHA = 1.6732632423543772848170429916717
SELU_SCALE = 1.0507009873554804934193349852946
BN_EPS = 1e-5
_MIB = 1024 * 1024


# ----------------------------------------------------------------------------
# Kernel
# ----------------------------------------------------------------------------
def _gat_kernel(x_ref, wp_ref, bp_ref, aw_ref, wc_ref, bc_ref, o_ref, xp_ref,
                *, n, din, compute_dtype, split_proj):
    bt, n_pad, dp = xp_ref.shape
    dop = wp_ref.shape[1]

    # ---- zero-pad x (node dim -> N_pad, feature dim -> Dp) inside VMEM ------
    if n == n_pad and din == dp:
        x = x_ref[...].astype(jnp.float32)                       # (Bt, Np, Dp)
    else:
        xp_ref[...] = jnp.zeros_like(xp_ref)
        xp_ref[:, :n, :din] = x_ref[...].astype(jnp.float32)
        x = xp_ref[...]                                          # (Bt, Np, Dp)
    xc = x.astype(compute_dtype)

    # ---- pairwise multiplication of nodes: pw[b,i,j,:] = x[b,i,:]*x[b,j,:] --
    pw = xc[:, :, None, :] * xc[:, None, :, :]                   # (Bt,Np,Np,Dp)
    pw2 = pw.reshape(bt * n_pad * n_pad, dp).astype(jnp.bfloat16)

    # ---- att_proj (Linear) + tanh: bf16 MXU operands, f32 accumulation ------
    h_pre = (jnp.dot(pw2, wp_ref[...], preferred_element_type=jnp.float32)
             + bp_ref[...])                                      # (Bt*Np*Np, Dop)
    h = jnp.tanh(h_pre.astype(compute_dtype))                    # bf16 EUP on v6e/v7x
    h = h.reshape(bt, n_pad, n_pad, dop)

    # ---- attention logits: VPU multiply + lane reduce (1/temp folded in aw) -
    logits = jnp.sum(h.astype(jnp.float32) * aw_ref[...], axis=-1)   # (Bt,Np,Np)

    # ---- softmax over the neighbour axis j (mask padded nodes) --------------
    if n < n_pad:
        j_idx = jax.lax.broadcasted_iota(jnp.int32, (n_pad, n_pad), 1)
        logits = jnp.where((j_idx < n)[None, :, :], logits, -1e30)
    m = jnp.max(logits, axis=-1, keepdims=True)
    e = jnp.exp(logits - m)
    att = e / jnp.sum(e, axis=-1, keepdims=True)                 # exact divide

    # ---- neighbour aggregation on the VPU (no tiny batched MXU matmuls) -----
    agg = jnp.sum(att[:, :, :, None] * x[:, None, :, :], axis=2)     # (Bt,Np,Dp)

    # ---- fused projection (eval BN folded into wc/bc) -----------------------
    agg2 = agg.reshape(bt * n_pad, dp).astype(jnp.bfloat16)
    x2 = x.reshape(bt * n_pad, dp).astype(jnp.bfloat16)
    if split_proj:
        # v5e: two K=Dp dots, skip materializing the (Bt*Np, 2Dp) concat.
        y = (jnp.dot(agg2, wc_ref[pl.ds(0, dp), :], preferred_element_type=jnp.float32)
             + jnp.dot(x2, wc_ref[pl.ds(dp, dp), :], preferred_element_type=jnp.float32)
             + bc_ref[...])
    else:
        # v6e/v7x: single K=2*Dp matmul fills the 256-deep MXU.
        z = jnp.concatenate([agg2, x2], axis=-1)
        y = jnp.dot(z, wc_ref[...], preferred_element_type=jnp.float32) + bc_ref[...]

    # ---- SELU (clamp before exp so the discarded branch never overflows) ----
    y = SELU_SCALE * jnp.where(
        y > 0, y, SELU_ALPHA * (jnp.exp(jnp.minimum(y, 0.0)) - 1.0))

    y = y.reshape(bt, n_pad, dop)
    o_ref[...] = y[:, :n, :].astype(o_ref.dtype)


# ----------------------------------------------------------------------------
# Wrapper
# ----------------------------------------------------------------------------
def _round_up(v, m):
    return (v + m - 1) // m * m


def _tpu_config():
    """Generation-aware knobs: bf16 EUP availability, #TCs, VMEM limit."""
    kind = ""
    try:
        kind = jax.devices()[0].device_kind.lower()
    except Exception:
        pass
    is_v7 = ("v7" in kind) or ("7x" in kind)
    is_v6 = "v6" in kind
    is_v5 = "v5" in kind
    bf16_eup = is_v6 or is_v7            # v5e VPU/EUP have no bf16 -> stay f32
    num_tc = 2 if is_v7 else 1
    phys_vmem = None
    try:
        phys_vmem = int(pltpu.get_tpu_info().vmem_capacity_bytes)
    except Exception:
        phys_vmem = None
    if phys_vmem is None:
        phys_vmem = (64 if is_v7 else (128 if (is_v5 or is_v6) else 64)) * _MIB
    vmem_limit = max(16 * _MIB, min(phys_vmem // 2, 64 * _MIB))
    return bf16_eup, num_tc, int(vmem_limit), is_v5


def _pick_batch_tile(B, n_pad, dp, dop, vmem_limit, num_tc):
    """Largest Bt whose live intermediates fit the per-generation VMEM budget,
    while keeping >= 2*num_tc grid steps for pipelining / megacore sharding."""
    # ~6 live (Bt, Np, Np, D) f32-equivalent buffers dominate (pw, matmul out,
    # h, logit product, agg product, slack for casts).
    inter = 6 * n_pad * n_pad * max(dp, dop) * 4
    small = 4 * n_pad * (3 * dp + 4 * dop)          # x scratch, agg, y, i/o blocks
    budget = vmem_limit // 2                        # headroom for weights + dbuf
    bt = max(1, int(budget // (inter + small)))
    bt = min(bt, 64, B)
    min_steps = 2 * num_tc
    if B > 1:
        bt = min(bt, max(1, -(-B // min_steps)))
    return bt


def graph_attention_layer(x, params, temp=1.0):
    B, N, Din = x.shape
    Dout = params["att_proj_w"].shape[1]
    Dp = _round_up(Din, 128)                       # padded contraction dim
    Dop = _round_up(Dout, 128)                     # padded (lane-dense) output dim
    Np = _round_up(N, 8)                           # sublane-aligned node dim

    bf16_eup, num_tc, vmem_limit, is_v5 = _tpu_config()
    compute_dtype = jnp.bfloat16 if bf16_eup else jnp.float32
    f32 = jnp.float32

    def pad2(w, r, c, dtype):
        w = jnp.pad(w.astype(f32), ((0, r - w.shape[0]), (0, c - w.shape[1])))
        return w.astype(dtype)

    def pad_row(v, c):
        return jnp.pad(v.astype(f32), (0, c - v.shape[0])).reshape(1, c)

    # ---- fold eval-mode BatchNorm into projection weights / a single bias ---
    bn_scale = params["bn_gamma"] / jnp.sqrt(params["bn_var"] + BN_EPS)
    bn_shift = params["bn_beta"] - params["bn_mean"] * bn_scale

    wp = pad2(params["att_proj_w"], Dp, Dop, jnp.bfloat16)              # (Dp, Dop)
    bp = pad_row(params["att_proj_b"], Dop)                             # (1, Dop)
    aw = pad_row(params["att_weight"][:, 0] / temp, Dop)                # (1, Dop)
    wc = jnp.concatenate(                                               # (2*Dp, Dop)
        [pad2(params["proj_with_att_w"] * bn_scale[None, :], Dp, Dop, jnp.bfloat16),
         pad2(params["proj_without_att_w"] * bn_scale[None, :], Dp, Dop, jnp.bfloat16)],
        axis=0)
    bc = pad_row((params["proj_with_att_b"] + params["proj_without_att_b"])
                 * bn_scale + bn_shift, Dop)                            # (1, Dop)

    # ---- batch tiling (only the batch dim is padded in HBM) -----------------
    Bt = _pick_batch_tile(B, Np, Dp, Dop, vmem_limit, num_tc)
    Bp = _round_up(B, Bt)
    x_p = x if Bp == B else jnp.pad(x, ((0, Bp - B), (0, 0), (0, 0)))

    kernel = functools.partial(_gat_kernel, n=N, din=Din,
                               compute_dtype=compute_dtype, split_proj=is_v5)

    def wspec(arr):
        return pl.BlockSpec(arr.shape, lambda b: (0, 0))

    grid_spec = pltpu.PrefetchScalarGridSpec(
        num_scalar_prefetch=0,
        grid=(Bp // Bt,),
        in_specs=[pl.BlockSpec((Bt, N, Din), lambda b: (b, 0, 0)),
                  wspec(wp), wspec(bp), wspec(aw), wspec(wc), wspec(bc)],
        out_specs=pl.BlockSpec((Bt, N, Dop), lambda b: (b, 0, 0)),
        scratch_shapes=[pltpu.VMEM((Bt, Np, Dp), jnp.float32)],
    )

    out = pl.pallas_call(
        kernel,
        out_shape=jax.ShapeDtypeStruct((Bp, N, Dop), x.dtype),
        grid_spec=grid_spec,
        compiler_params=pltpu.CompilerParams(
            dimension_semantics=("parallel",),
            vmem_limit_bytes=vmem_limit),
    )(x_p, wp, bp, aw, wc, bc)

    # slice off batch / output-feature padding (padding is numerically exact)
    return out[:B, :, :Dout]


# ----------------------------------------------------------------------------
# Pure-JAX reference (mirrors the PyTorch eval-mode forward)
# ----------------------------------------------------------------------------
def graph_attention_layer_ref(x, params, temp=1.0):
    pw = x[:, :, None, :] * x[:, None, :, :]                  # (B, N, N, Din)
    h = jnp.tanh(pw @ params["att_proj_w"] + params["att_proj_b"])
    att = (h @ params["att_weight"]) / temp                   # (B, N, N, 1)
    att = jax.nn.softmax(att, axis=-2)
    att = att[..., 0]                                         # (B, N, N)
    x1 = (att @ x) @ params["proj_with_att_w"] + params["proj_with_att_b"]
    x2 = x @ params["proj_without_att_w"] + params["proj_without_att_b"]
    y = x1 + x2
    y = (y - params["bn_mean"]) / jnp.sqrt(params["bn_var"] + BN_EPS)
    y = y * params["bn_gamma"] + params["bn_beta"]
    return SELU_SCALE * jnp.where(y > 0, y, SELU_ALPHA * (jnp.exp(y) - 1.0))


def init_params(key, in_dim, out_dim):
    ks = jax.random.split(key, 8)
    s = 0.1
    return {
        # Linear weights stored as (in_dim, out_dim)  (PyTorch weight.T)
        "att_proj_w": s * jax.random.normal(ks[0], (in_dim, out_dim), jnp.float32),
        "att_proj_b": s * jax.random.normal(ks[1], (out_dim,), jnp.float32),
        "att_weight": s * jax.random.normal(ks[2], (out_dim, 1), jnp.float32),
        "proj_with_att_w": s * jax.random.normal(ks[3], (in_dim, out_dim), jnp.float32),
        "proj_with_att_b": s * jax.random.normal(ks[4], (out_dim,), jnp.float32),
        "proj_without_att_w": s * jax.random.normal(ks[5], (in_dim, out_dim), jnp.float32),
        "proj_without_att_b": s * jax.random.normal(ks[6], (out_dim,), jnp.float32),
        # BatchNorm1d (eval-mode running stats + affine)
        "bn_gamma": 1.0 + 0.05 * jax.random.normal(ks[7], (out_dim,), jnp.float32),
        "bn_beta": jnp.linspace(-0.1, 0.1, out_dim, dtype=jnp.float32),
        "bn_mean": jnp.linspace(-0.05, 0.05, out_dim, dtype=jnp.float32),
        "bn_var": jnp.linspace(0.8, 1.2, out_dim, dtype=jnp.float32),
    }


if __name__ == "__main__":
    B, N, D_IN, D_OUT = 2, 8, 16, 16
    TEMP = 2.0   # non-trivial temperature exercises the 1/temp weight folding

    key = jax.random.PRNGKey(0)
    kx, kp = jax.random.split(key)
    x = jax.random.normal(kx, (B, N, D_IN), jnp.float32)
    params = init_params(kp, D_IN, D_OUT)

    out = jax.block_until_ready(graph_attention_layer(x, params, temp=TEMP))
    ref = graph_attention_layer_ref(x, params, temp=TEMP)

    # Tolerance reflects bf16 MXU operands (and bf16 tanh on v6e/v7x) vs the
    # f32 reference; softmax itself uses an exact divide.
    np.testing.assert_allclose(np.asarray(out), np.asarray(ref),
                               rtol=3e-2, atol=1e-2)
    print("KERNEL_OK")
</pallas_src>

<mosaic_0001>
module attributes {stable_mosaic.version = 11 : i64} {
  func.func @_gat_kernel(%arg0: i32, %arg1: memref<1x8x16xf32, #tpu.memory_space<vmem>>, %arg2: memref<128x128xbf16, #tpu.memory_space<vmem>>, %arg3: memref<1x128xf32, #tpu.memory_space<vmem>>, %arg4: memref<1x128xf32, #tpu.memory_space<vmem>>, %arg5: memref<256x128xbf16, #tpu.memory_space<vmem>>, %arg6: memref<1x128xf32, #tpu.memory_space<vmem>>, %arg7: memref<1x8x128xf32, #tpu.memory_space<vmem>>, %arg8: memref<1x8x128xf32, #tpu.memory_space<vmem>>) attributes {dimension_semantics = [#tpu.dimension_semantics<parallel>], iteration_bounds = array<i64: 2>, scalar_prefetch = 0 : i64, scratch_operands = 1 : i64, tpu.core_type = #tpu.core_type<tc>, window_params = [{transform_indices = @transform_0, window_bounds = array<i64: 1, 8, 16>}, {pipeline_mode = #tpu.pipeline_mode<synchronous>, transform_indices = @transform_1, window_bounds = array<i64: 128, 128>}, {pipeline_mode = #tpu.pipeline_mode<synchronous>, transform_indices = @transform_2, window_bounds = array<i64: 1, 128>}, {pipeline_mode = #tpu.pipeline_mode<synchronous>, transform_indices = @transform_3, window_bounds = array<i64: 1, 128>}, {pipeline_mode = #tpu.pipeline_mode<synchronous>, transform_indices = @transform_4, window_bounds = array<i64: 256, 128>}, {pipeline_mode = #tpu.pipeline_mode<synchronous>, transform_indices = @transform_5, window_bounds = array<i64: 1, 128>}, {transform_indices = @transform_6, window_bounds = array<i64: 1, 8, 128>}]} {
    %cst = arith.constant 0.000000e+00 : f32
    %0 = vector.broadcast %cst : f32 to vector<1x8x128xf32>
    %c0 = arith.constant 0 : index
    %c0_0 = arith.constant 0 : index
    %c0_1 = arith.constant 0 : index
    %1 = vector.load %arg8[%c0, %c0_0, %c0_1] : memref<1x8x128xf32, #tpu.memory_space<vmem>>, vector<1x8x128xf32>
    tpu.vector_store %arg8[%c0, %c0_0, %c0_1], %0 {strides = array<i32>} : memref<1x8x128xf32, #tpu.memory_space<vmem>>, vector<1x8x128xf32>,
    %c0_2 = arith.constant 0 : index
    %c0_3 = arith.constant 0 : index
    %c0_4 = arith.constant 0 : index
    %2 = vector.load %arg1[%c0_2, %c0_3, %c0_4] : memref<1x8x16xf32, #tpu.memory_space<vmem>>, vector<1x8x16xf32>
    %c0_5 = arith.constant 0 : index
    %c0_6 = arith.constant 0 : index
    %c0_7 = arith.constant 0 : index
    %3 = vector.load %arg8[%c0_5, %c0_6, %c0_7] : memref<1x8x128xf32, #tpu.memory_space<vmem>>, vector<1x8x16xf32>
    tpu.vector_store %arg8[%c0_5, %c0_6, %c0_7], %2 {strides = array<i32>} : memref<1x8x128xf32, #tpu.memory_space<vmem>>, vector<1x8x16xf32>,
    %c0_8 = arith.constant 0 : index
    %c0_9 = arith.constant 0 : index
    %c0_10 = arith.constant 0 : index
    %4 = vector.load %arg8[%c0_8, %c0_9, %c0_10] : memref<1x8x128xf32, #tpu.memory_space<vmem>>, vector<1x8x128xf32>
    %5 = vector.shape_cast %4 : vector<1x8x128xf32> to vector<1x8x1x128xf32>
    %6 = vector.shape_cast %4 : vector<1x8x128xf32> to vector<1x1x8x128xf32>
    %7 = vector.broadcast %5 : vector<1x8x1x128xf32> to vector<1x8x8x128xf32>
    %8 = vector.broadcast %6 : vector<1x1x8x128xf32> to vector<1x8x8x128xf32>
    %9 = arith.mulf %7, %8 : vector<1x8x8x128xf32>
    %10 = vector.shape_cast %9 : vector<1x8x8x128xf32> to vector<64x128xf32>
    %11 = arith.truncf %10 : vector<64x128xf32> to vector<64x128xbf16>
    %c0_11 = arith.constant 0 : index
    %c0_12 = arith.constant 0 : index
    %12 = vector.load %arg2[%c0_11, %c0_12] : memref<128x128xbf16, #tpu.memory_space<vmem>>, vector<128x128xbf16>
    %cst_13 = arith.constant dense<0.000000e+00> : vector<64x128xf32>
    %13 = tpu.matmul %11, %12, %cst_13 {dimension_numbers = #tpu.dot_dimension_numbers<[1], [0], [0], [1], [0, 0, 1, 1], [], []>} : vector<64x128xbf16>, vector<128x128xbf16>, vector<64x128xf32> -> vector<64x128xf32>
    %c0_14 = arith.constant 0 : index
    %c0_15 = arith.constant 0 : index
    %14 = vector.load %arg3[%c0_14, %c0_15] : memref<1x128xf32, #tpu.memory_space<vmem>>, vector<1x128xf32>
    %15 = vector.broadcast %14 : vector<1x128xf32> to vector<64x128xf32>
    %16 = arith.addf %13, %15 : vector<64x128xf32>
    %17 = math.tanh %16 : vector<64x128xf32>
    %18 = vector.shape_cast %17 : vector<64x128xf32> to vector<1x8x8x128xf32>
    %c0_16 = arith.constant 0 : index
    %c0_17 = arith.constant 0 : index
    %19 = vector.load %arg4[%c0_16, %c0_17] : memref<1x128xf32, #tpu.memory_space<vmem>>, vector<1x128xf32>
    %20 = vector.shape_cast %19 : vector<1x128xf32> to vector<1x1x1x128xf32>
    %21 = vector.broadcast %20 : vector<1x1x1x128xf32> to vector<1x8x8x128xf32>
    %22 = arith.mulf %18, %21 : vector<1x8x8x128xf32>
    %cst_18 = arith.constant dense<0.000000e+00> : vector<1x8x8xf32>
    %23 = vector.multi_reduction <add>, %22, %cst_18 [3] : vector<1x8x8x128xf32> to vector<1x8x8xf32>
    %cst_19 = arith.constant dense<0xFF800000> : vector<1x8xf32>
    %24 = vector.multi_reduction <maximumf>, %23, %cst_19 [2] : vector<1x8x8xf32> to vector<1x8xf32>
    %25 = vector.shape_cast %24 : vector<1x8xf32> to vector<1x8x1xf32>
    %26 = vector.broadcast %25 : vector<1x8x1xf32> to vector<1x8x8xf32>
    %27 = arith.subf %23, %26 : vector<1x8x8xf32>
    %28 = math.exp %27 : vector<1x8x8xf32>
    %cst_20 = arith.constant dense<0.000000e+00> : vector<1x8xf32>
    %29 = vector.multi_reduction <add>, %28, %cst_20 [2] : vector<1x8x8xf32> to vector<1x8xf32>
    %30 = vector.shape_cast %29 : vector<1x8xf32> to vector<1x8x1xf32>
    %31 = vector.broadcast %30 : vector<1x8x1xf32> to vector<1x8x8xf32>
    %32 = arith.divf %28, %31 : vector<1x8x8xf32>
    %33 = vector.shape_cast %32 : vector<1x8x8xf32> to vector<1x8x8x1xf32>
    %34 = vector.shape_cast %4 : vector<1x8x128xf32> to vector<1x1x8x128xf32>
    %35 = vector.broadcast %33 : vector<1x8x8x1xf32> to vector<1x8x8x128xf32>
    %36 = vector.broadcast %34 : vector<1x1x8x128xf32> to vector<1x8x8x128xf32>
    %37 = arith.mulf %35, %36 : vector<1x8x8x128xf32>
    %cst_21 = arith.constant dense<0.000000e+00> : vector<1x8x128xf32>
    %38 = vector.multi_reduction <add>, %37, %cst_21 [2] : vector<1x8x8x128xf32> to vector<1x8x128xf32>
    %39 = vector.shape_cast %38 : vector<1x8x128xf32> to vector<8x128xf32>
    %40 = arith.truncf %39 : vector<8x128xf32> to vector<8x128xbf16>
    %41 = vector.shape_cast %4 : vector<1x8x128xf32> to vector<8x128xf32>
    %42 = arith.truncf %41 : vector<8x128xf32> to vector<8x128xbf16>
    %43 = tpu.concatenate %40, %42 in 1 : vector<8x128xbf16>, vector<8x128xbf16> -> vector<8x256xbf16>
    %c0_22 = arith.constant 0 : index
    %c0_23 = arith.constant 0 : index
    %44 = vector.load %arg5[%c0_22, %c0_23] : memref<256x128xbf16, #tpu.memory_space<vmem>>, vector<256x128xbf16>
    %cst_24 = arith.constant dense<0.000000e+00> : vector<8x128xf32>
    %45 = tpu.matmul %43, %44, %cst_24 {dimension_numbers = #tpu.dot_dimension_numbers<[1], [0], [0], [1], [0, 0, 1, 1], [], []>} : vector<8x256xbf16>, vector<256x128xbf16>, vector<8x128xf32> -> vector<8x128xf32>
    %c0_25 = arith.constant 0 : index
    %c0_26 = arith.constant 0 : index
    %46 = vector.load %arg6[%c0_25, %c0_26] : memref<1x128xf32, #tpu.memory_space<vmem>>, vector<1x128xf32>
    %47 = vector.broadcast %46 : vector<1x128xf32> to vector<8x128xf32>
    %48 = arith.addf %45, %47 : vector<8x128xf32>
    %cst_27 = arith.constant 0.000000e+00 : f32
    %49 = vector.broadcast %cst_27 : f32 to vector<8x128xf32>
    %50 = arith.cmpf ogt, %48, %49 : vector<8x128xf32>
    %cst_28 = arith.constant 0.000000e+00 : f32
    %51 = vector.broadcast %cst_28 : f32 to vector<8x128xf32>
    %52 = arith.minimumf %48, %51 : vector<8x128xf32>
    %53 = math.exp %52 : vector<8x128xf32>
    %cst_29 = arith.constant 1.000000e+00 : f32
    %54 = vector.broadcast %cst_29 : f32 to vector<8x128xf32>
    %55 = arith.subf %53, %54 : vector<8x128xf32>
    %cst_30 = arith.constant 1.67326319 : f32
    %56 = vector.broadcast %cst_30 : f32 to vector<8x128xf32>
    %57 = arith.mulf %56, %55 : vector<8x128xf32>
    %58 = arith.select %50, %48, %57 : vector<8x128xi1>, vector<8x128xf32>
    %cst_31 = arith.constant 1.05070102 : f32
    %59 = vector.broadcast %cst_31 : f32 to vector<8x128xf32>
    %60 = arith.mulf %59, %58 : vector<8x128xf32>
    %61 = vector.shape_cast %60 : vector<8x128xf32> to vector<1x8x128xf32>
    %c0_32 = arith.constant 0 : index
    %c0_33 = arith.constant 0 : index
    %c0_34 = arith.constant 0 : index
    %62 = vector.load %arg7[%c0_32, %c0_33, %c0_34] : memref<1x8x128xf32, #tpu.memory_space<vmem>>, vector<1x8x128xf32>
    tpu.vector_store %arg7[%c0_32, %c0_33, %c0_34], %61 {strides = array<i32>} : memref<1x8x128xf32, #tpu.memory_space<vmem>>, vector<1x8x128xf32>,
    return
  }
  func.func @transform_0(%arg0: i32) -> (i32, i32, i32) {
    %c0_i32 = arith.constant 0 : i32
    %c0_i32_0 = arith.constant 0 : i32
    %c0_i32_1 = arith.constant 0 : i32
    return %arg0, %c0_i32, %c0_i32_0 : i32, i32, i32
  }
  func.func @transform_1(%arg0: i32) -> (i32, i32) {
    %c0_i32 = arith.constant 0 : i32
    %c0_i32_0 = arith.constant 0 : i32
    %c0_i32_1 = arith.constant 0 : i32
    return %c0_i32, %c0_i32_0 : i32, i32
  }
  func.func @transform_2(%arg0: i32) -> (i32, i32) {
    %c0_i32 = arith.constant 0 : i32
    %c0_i32_0 = arith.constant 0 : i32
    %c0_i32_1 = arith.constant 0 : i32
    return %c0_i32, %c0_i32_0 : i32, i32
  }
  func.func @transform_3(%arg0: i32) -> (i32, i32) {
    %c0_i32 = arith.constant 0 : i32
    %c0_i32_0 = arith.constant 0 : i32
    %c0_i32_1 = arith.constant 0 : i32
    return %c0_i32, %c0_i32_0 : i32, i32
  }
  func.func @transform_4(%arg0: i32) -> (i32, i32) {
    %c0_i32 = arith.constant 0 : i32
    %c0_i32_0 = arith.constant 0 : i32
    %c0_i32_1 = arith.constant 0 : i32
    return %c0_i32, %c0_i32_0 : i32, i32
  }
  func.func @transform_5(%arg0: i32) -> (i32, i32) {
    %c0_i32 = arith.constant 0 : i32
    %c0_i32_0 = arith.constant 0 : i32
    %c0_i32_1 = arith.constant 0 : i32
    return %c0_i32, %c0_i32_0 : i32, i32
  }
  func.func @transform_6(%arg0: i32) -> (i32, i32, i32) {
    %c0_i32 = arith.constant 0 : i32
    %c0_i32_0 = arith.constant 0 : i32
    %c0_i32_1 = arith.constant 0 : i32
    return %arg0, %c0_i32, %c0_i32_0 : i32, i32, i32
  }
}

</mosaic_0001>

<llo_original>
// kernel: tpu_custom_call.1
$region0: #{tpu_custom_call.1}
  #allocation0 [shape = 'u32[]', space=smem, size = 0x4, offset = 0x4, fixed_abs, tag = 'smem constant byte address 0x4 - core index']
  #allocation1 [shape = 'u32[144,128]{1,0:T(1,128)}', space=vmem, size = 0x12000, scoped, tag = 'internal scratch']
  #allocation2 [shape = 'f32[1,8,128]{2,1,0:T(8,128)}', space=vmem, size = 0x1000, scoped, tag = 'scratch operand']
  %s0 = inlined_call_operand.hbm [shape: f32[2,8,16], index: 0, kind: input, shape index: {}]
  %s1 = inlined_call_operand.hbm [shape: bf16[128,128], index: 1, kind: input, shape index: {}]
  %s2 = inlined_call_operand.vmem [shape: f32[1,128], index: 2, kind: input, shape index: {}]
  %s3 = inlined_call_operand.vmem [shape: f32[1,128], index: 3, kind: input, shape index: {}]
  %s4 = inlined_call_operand.hbm [shape: bf16[256,128], index: 4, kind: input, shape index: {}]
  %s5 = inlined_call_operand.vmem [shape: f32[1,128], index: 5, kind: input, shape index: {}]
  %s6 = inlined_call_operand.hbm [shape: f32[2,8,128], index: 6, kind: output, shape index: {}]
  %s7 = sld [smem:[#allocation0]]
  $region69: #{tpu_custom_call.1} parent=0
    _
  %s9 = ssub.s32 1, %s7
  %s10 = scalar_select 0, %s9, %s7
  $region1: #{tpu_custom_call.1} parent=0
    #allocation3 [shape = 'u8[8192]{0}', space=vmem, size = 0x2000, scoped, tag = 'input window, operand 0']
    #allocation4 [shape = 's32[2]{0}', space=sflag, size = 0x8, scoped, tag = 'scoped memory for tpu_custom_call.1']
    #allocation5 [shape = 's32[2]{0}', space=sflag, size = 0x8, scoped, tag = 'scoped memory for tpu_custom_call.1']
    #allocation6 [shape = 'u8[32768]{0}', space=vmem, size = 0x8000, scoped, tag = 'input window, operand 1, single buffered']
    #allocation7 [shape = 's32[1]{0}', space=sflag, size = 0x4, scoped, tag = 'scoped memory for tpu_custom_call.1']
    #allocation8 [shape = 'u8[65536]{0}', space=vmem, size = 0x10000, scoped, tag = 'input window, operand 4, single buffered']
    #allocation9 [shape = 'u8[8192]{0}', space=vmem, size = 0x2000, scoped, tag = 'output window, operand 0']
    %11 = vsyncpa [#allocation4], 0
    %s12 = scalar_lea.sflag [#allocation4], 1
    %13 = vsyncpa %s12, 0
    %14 = vsyncpa [#allocation7], 0
    %15 = vsyncpa [#allocation5], 0
    %s16 = scalar_lea.sflag [#allocation5], 1
    %17 = vsyncpa %s16, 0
    loop: start=0, step=1, limit=4
    $region2: #{tpu_custom_call.1} parent=1 // loop_pre_header
      _
    $region3: #{tpu_custom_call.1} parent=1 // loop_header
      %s19 = sphi 0, %s23
      %p20 = scmp.ge.s32.totalorder %s19, 4
      %s29 = sphi 0, %s31
      %s32 = sphi 0, %s29
      %s33 = sphi 0, %s32
      %s49 = sphi 0, %s33
      %s53 = sphi 0, %s53
      %s55 = sphi 0, %s53
      %s56 = sphi 0, %s55
      %s70 = sphi 0, %s56
      %s74 = sphi 0, %s74
      %s76 = sphi 0, %s74
      %s77 = sphi 0, %s76
      %s91 = sphi 0, %s77
      %s95 = sphi 0, %s95
      %s97 = sphi 0, %s95
      %s98 = sphi 0, %s97
      %s112 = sphi 0, %s98
      %s116 = sphi 0, %s116
      %s118 = sphi 0, %s116
      %s119 = sphi 0, %s118
      %s133 = sphi 0, %s119
      %s137 = sphi 0, %s137
      %s139 = sphi 0, %s137
      %s140 = sphi 0, %s139
      %s154 = sphi 0, %s140
      %s160 = sphi 0, %s162
      %s163 = sphi 0, %s160
      %s164 = sphi 0, %s163
      %s180 = sphi 0, %s164
    $region4: #{tpu_custom_call.1} parent=1 // loop_header_branch
      %22 = sbr.rel (%p20) target = $region8
    $region5: #{tpu_custom_call.1} parent=1 // loop_body
      %s24 = ssub.s32 %s19, 1
      %s25 = ssub.s32 %s19, 2
      %s26 = sadd.s32 %s19, 1
      %s27 = ssub.s32 %s19, %s26
      %p28 = scmp.eq.s32.totalorder %s27, 0
      %s30 = sadd.s32 %s29, 1
      %s31 = scalar_select %p28, %s29, %s30
      %p34 = pneg %p28
      %p35 = scmp.eq.s32.totalorder %s19, 1
      %p36 = por %p34, %p35
      %p37 = scmp.ne.s32.totalorder %s29, %s32
      %p38 = scmp.eq.s32.totalorder %s19, 0
      %p39 = por %p37, %p38
      %p40 = scmp.ne.s32.totalorder %s29, %s32
      %p41 = scmp.eq.s32.totalorder %s24, 1
      %p42 = por %p40, %p41
      %p43 = scmp.ne.s32.totalorder %s32, %s33
      %p44 = scmp.eq.s32.totalorder %s24, 0
      %p45 = por %p43, %p44
      %p46 = scmp.ne.s32.totalorder %s32, %s33
      %p47 = scmp.eq.s32.totalorder %s25, 1
      %p48 = por %p46, %p47
      %p50 = scmp.ne.s32.totalorder %s33, %s49
      %p51 = scmp.eq.s32.totalorder %s25, 0
      %p52 = por %p50, %p51
      %s54 = sadd.s32 %s53, 1
      %p57 = scmp.eq.s32.totalorder %s19, 1
      %p58 = scmp.ne.s32.totalorder %s53, %s55
      %p59 = scmp.eq.s32.totalorder %s19, 0
      %p60 = por %p58, %p59
      %p61 = scmp.ne.s32.totalorder %s53, %s55
      %p62 = scmp.eq.s32.totalorder %s24, 1
      %p63 = por %p61, %p62
      %p64 = scmp.ne.s32.totalorder %s55, %s56
      %p65 = scmp.eq.s32.totalorder %s24, 0
      %p66 = por %p64, %p65
      %p67 = scmp.ne.s32.totalorder %s55, %s56
      %p68 = scmp.eq.s32.totalorder %s25, 1
      %p69 = por %p67, %p68
      %p71 = scmp.ne.s32.totalorder %s56, %s70
      %p72 = scmp.eq.s32.totalorder %s25, 0
      %p73 = por %p71, %p72
      %s75 = sadd.s32 %s74, 1
      %p78 = scmp.eq.s32.totalorder %s19, 1
      %p79 = scmp.ne.s32.totalorder %s74, %s76
      %p80 = scmp.eq.s32.totalorder %s19, 0
      %p81 = por %p79, %p80
      %p82 = scmp.ne.s32.totalorder %s74, %s76
      %p83 = scmp.eq.s32.totalorder %s24, 1
      %p84 = por %p82, %p83
      %p85 = scmp.ne.s32.totalorder %s76, %s77
      %p86 = scmp.eq.s32.totalorder %s24, 0
      %p87 = por %p85, %p86
      %p88 = scmp.ne.s32.totalorder %s76, %s77
      %p89 = scmp.eq.s32.totalorder %s25, 1
      %p90 = por %p88, %p89
      %p92 = scmp.ne.s32.totalorder %s77, %s91
      %p93 = scmp.eq.s32.totalorder %s25, 0
      %p94 = por %p92, %p93
      %s96 = sadd.s32 %s95, 1
      %p99 = scmp.eq.s32.totalorder %s19, 1
      %p100 = scmp.ne.s32.totalorder %s95, %s97
      %p101 = scmp.eq.s32.totalorder %s19, 0
      %p102 = por %p100, %p101
      %p103 = scmp.ne.s32.totalorder %s95, %s97
      %p104 = scmp.eq.s32.totalorder %s24, 1
      %p105 = por %p103, %p104
      %p106 = scmp.ne.s32.totalorder %s97, %s98
      %p107 = scmp.eq.s32.totalorder %s24, 0
      %p108 = por %p106, %p107
      %p109 = scmp.ne.s32.totalorder %s97, %s98
      %p110 = scmp.eq.s32.totalorder %s25, 1
      %p111 = por %p109, %p110
      %p113 = scmp.ne.s32.totalorder %s98, %s112
      %p114 = scmp.eq.s32.totalorder %s25, 0
      %p115 = por %p113, %p114
      %s117 = sadd.s32 %s116, 1
      %p120 = scmp.eq.s32.totalorder %s19, 1
      %p121 = scmp.ne.s32.totalorder %s116, %s118
      %p122 = scmp.eq.s32.totalorder %s19, 0
      %p123 = por %p121, %p122
      %p124 = scmp.ne.s32.totalorder %s116, %s118
      %p125 = scmp.eq.s32.totalorder %s24, 1
      %p126 = por %p124, %p125
      %p127 = scmp.ne.s32.totalorder %s118, %s119
      %p128 = scmp.eq.s32.totalorder %s24, 0
      %p129 = por %p127, %p128
      %p130 = scmp.ne.s32.totalorder %s118, %s119
      %p131 = scmp.eq.s32.totalorder %s25, 1
      %p132 = por %p130, %p131
      %p134 = scmp.ne.s32.totalorder %s119, %s133
      %p135 = scmp.eq.s32.totalorder %s25, 0
      %p136 = por %p134, %p135
      %s138 = sadd.s32 %s137, 1
      %p141 = scmp.eq.s32.totalorder %s19, 1
      %p142 = scmp.ne.s32.totalorder %s137, %s139
      %p143 = scmp.eq.s32.totalorder %s19, 0
      %p144 = por %p142, %p143
      %p145 = scmp.ne.s32.totalorder %s137, %s139
      %p146 = scmp.eq.s32.totalorder %s24, 1
      %p147 = por %p145, %p146
      %p148 = scmp.ne.s32.totalorder %s139, %s140
      %p149 = scmp.eq.s32.totalorder %s24, 0
      %p150 = por %p148, %p149
      %p151 = scmp.ne.s32.totalorder %s139, %s140
      %p152 = scmp.eq.s32.totalorder %s25, 1
      %p153 = por %p151, %p152
      %p155 = scmp.ne.s32.totalorder %s140, %s154
      %p156 = scmp.eq.s32.totalorder %s25, 0
      %p157 = por %p155, %p156
      %s158 = ssub.s32 %s19, %s26
      %p159 = scmp.eq.s32.totalorder %s158, 0
      %s161 = sadd.s32 %s160, 1
      %s162 = scalar_select %p159, %s160, %s161
      %p165 = pneg %p159
      %p166 = scmp.eq.s32.totalorder %s19, 1
      %p167 = por %p165, %p166
      %p168 = scmp.ne.s32.totalorder %s160, %s163
      %p169 = scmp.eq.s32.totalorder %s19, 0
      %p170 = por %p168, %p169
      %p171 = scmp.ne.s32.totalorder %s160, %s163
      %p172 = scmp.eq.s32.totalorder %s24, 1
      %p173 = por %p171, %p172
      %p174 = scmp.ne.s32.totalorder %s163, %s164
      %p175 = scmp.eq.s32.totalorder %s24, 0
      %p176 = por %p174, %p175
      %p177 = scmp.ne.s32.totalorder %s163, %s164
      %p178 = scmp.eq.s32.totalorder %s25, 1
      %p179 = por %p177, %p178
      %p181 = scmp.ne.s32.totalorder %s164, %s180
      %p182 = scmp.eq.s32.totalorder %s25, 0
      %p183 = por %p181, %p182
      %p184 = scmp.le.s32.totalorder 1, %s19
      %p185 = scmp.lt.s32.totalorder %s19, 3
      %p186 = pnand %p184, %p185
      %p187 = pneg %p186
      // Predicated region
      $region9: #{tpu_custom_call.1} parent=5 // pred_check
        _
      $region10: #{tpu_custom_call.1} parent=5 // pred_check_branch
        %189 = sbr.rel (%p186) target = $region12
      $region11: #{tpu_custom_call.1} parent=5 // pred_region
        %s190 = ssub.s32 %s19, 1
        // Predicated region
        $region13: #{tpu_custom_call.1} parent=11 // pred_check
          %p191 = pneg %p66
        $region14: #{tpu_custom_call.1} parent=11 // pred_check_branch
          %193 = sbr.rel (%p191) target = $region16
        $region15: #{tpu_custom_call.1} parent=11 // pred_region
          %s195 = ssub.s32 1024, 1024
          %196 = vsyncadd [#allocation7], %s195
          %s197 = sshll.u32 [#allocation6], 4
          %s198 = int_to_ptr.vmem [resolvable:$true] %s197
          %203 = dma.hbm_to_vmem [thread:$0]  %s1, 1024, %s198, [#allocation7], 64, 64, 4
        $region16: #{tpu_custom_call.1} parent=11 // pred_fallthru
          _
        // Predicated region
        $region17: #{tpu_custom_call.1} parent=11 // pred_check
          %p204 = pneg %p87
        $region18: #{tpu_custom_call.1} parent=11 // pred_check_branch
          %206 = sbr.rel (%p204) target = $region20
        $region19: #{tpu_custom_call.1} parent=11 // pred_region
          _
        $region20: #{tpu_custom_call.1} parent=11 // pred_fallthru
          _
        // Predicated region
        $region21: #{tpu_custom_call.1} parent=11 // pred_check
          %p207 = pneg %p108
        $region22: #{tpu_custom_call.1} parent=11 // pred_check_branch
          %209 = sbr.rel (%p207) target = $region24
        $region23: #{tpu_custom_call.1} parent=11 // pred_region
          _
        $region24: #{tpu_custom_call.1} parent=11 // pred_fallthru
          _
        // Predicated region
        $region25: #{tpu_custom_call.1} parent=11 // pred_check
          %p210 = pneg %p129
        $region26: #{tpu_custom_call.1} parent=11 // pred_check_branch
          %212 = sbr.rel (%p210) target = $region28
        $region27: #{tpu_custom_call.1} parent=11 // pred_region
          %s214 = ssub.s32 2048, 2048
          %215 = vsyncadd [#allocation7], %s214
          %s216 = sshll.u32 [#allocation8], 4
          %s217 = int_to_ptr.vmem [resolvable:$true] %s216
          %222 = dma.hbm_to_vmem [thread:$0]  %s4, 2048, %s217, [#allocation7], 64, 64, 4
        $region28: #{tpu_custom_call.1} parent=11 // pred_fallthru
          _
        // Predicated region
        $region29: #{tpu_custom_call.1} parent=11 // pred_check
          %p223 = pneg %p150
        $region30: #{tpu_custom_call.1} parent=11 // pred_check_branch
          %225 = sbr.rel (%p223) target = $region32
        $region31: #{tpu_custom_call.1} parent=11 // pred_region
          _
        $region32: #{tpu_custom_call.1} parent=11 // pred_fallthru
          _
      $region12: #{tpu_custom_call.1} parent=5 // pred_fallthru
        _
      %p226 = scmp.lt.s32.totalorder %s19, 2
      // Predicated region
      $region33: #{tpu_custom_call.1} parent=5 // pred_check
        %p227 = pneg %p226
      $region34: #{tpu_custom_call.1} parent=5 // pred_check_branch
        %229 = sbr.rel (%p227) target = $region36
      $region35: #{tpu_custom_call.1} parent=5 // pred_region
        // Predicated region
        $region37: #{tpu_custom_call.1} parent=35 // pred_check
          %p230 = pneg %p39
        $region38: #{tpu_custom_call.1} parent=35 // pred_check_branch
          %232 = sbr.rel (%p230) target = $region40
        $region39: #{tpu_custom_call.1} parent=35 // pred_region
          %s233 = sand.u32 %s29, 1
          %s234 = scalar_lea.sflag [#allocation4], %s233
          %s235 = sand.u32 %s29, 1
          %s236 = smul.addr %s235, 8
          %s237 = scalar_lea.vmem [#allocation3], %s236
          %s239 = ssub.s32 128, 128
          %240 = vsyncadd %s234, %s239
          %s241 = smul.addr %s19, 128
          %s242 = scalar_lea.hbm %s0, %s241
          %s244 = sshll.u32 %s237, 4
          %s245 = int_to_ptr.vmem [resolvable:$true] %s244
          %247 = dma.hbm_to_vmem [thread:$0]  %s242, 128, %s245, %s234
        $region40: #{tpu_custom_call.1} parent=35 // pred_fallthru
          _
      $region36: #{tpu_custom_call.1} parent=5 // pred_fallthru
        _
      %p248 = scmp.le.s32.totalorder 1, %s19
      %p249 = scmp.lt.s32.totalorder %s19, 3
      %p250 = pnand %p248, %p249
      %p251 = pneg %p250
      // Predicated region
      $region41: #{tpu_custom_call.1} parent=5 // pred_check
        _
      $region42: #{tpu_custom_call.1} parent=5 // pred_check_branch
        %253 = sbr.rel (%p250) target = $region44
      $region43: #{tpu_custom_call.1} parent=5 // pred_region
        %s254 = ssub.s32 %s19, 1
        %s255 = sand.u32 %s32, 1
        %s256 = scalar_lea.sflag [#allocation4], %s255
        %s257 = sand.u32 %s32, 1
        %s258 = smul.addr %s257, 8
        %s259 = scalar_lea.vmem [#allocation3], %s258
        // Predicated region
        $region45: #{tpu_custom_call.1} parent=43 // pred_check
          %p260 = pneg %p45
        $region46: #{tpu_custom_call.1} parent=43 // pred_check_branch
          %262 = sbr.rel (%p260) target = $region48
        $region47: #{tpu_custom_call.1} parent=43 // pred_region
          %263 = dma.done %s256, 128
        $region48: #{tpu_custom_call.1} parent=43 // pred_fallthru
          _
        // Predicated region
        $region49: #{tpu_custom_call.1} parent=43 // pred_check
          %p264 = pneg %p66
        $region50: #{tpu_custom_call.1} parent=43 // pred_check_branch
          %266 = sbr.rel (%p264) target = $region52
        $region51: #{tpu_custom_call.1} parent=43 // pred_region
          %267 = dma.done [#allocation7], 1024
        $region52: #{tpu_custom_call.1} parent=43 // pred_fallthru
          _
        // Predicated region
        $region53: #{tpu_custom_call.1} parent=43 // pred_check
          %p268 = pneg %p129
        $region54: #{tpu_custom_call.1} parent=43 // pred_check_branch
          %270 = sbr.rel (%p268) target = $region56
        $region55: #{tpu_custom_call.1} parent=43 // pred_region
          %271 = dma.done [#allocation7], 2048
        $region56: #{tpu_custom_call.1} parent=43 // pred_fallthru
          _
        %s272 = sand.u32 %s32, 1
        %s273 = scalar_lea.sflag [#allocation4], %s272
        %s274 = sand.u32 %s32, 1
        %s275 = smul.addr %s274, 8
        %s276 = scalar_lea.vmem [#allocation3], %s275
        %p277 = pneg %p45
        %p278 = pneg %p42
        %p279 = pneg %p66
        %p280 = pneg %p63
        %p281 = pneg %p87
        %p282 = pneg %p84
        %p283 = pneg %p108
        %p284 = pneg %p105
        %p285 = pneg %p129
        %p286 = pneg %p126
        %p287 = pneg %p150
        %p288 = pneg %p147
        %p289 = pneg %p176
        %p290 = pneg %p173
        %s291 = sand.u32 %s163, 1
        %s292 = scalar_lea.sflag [#allocation5], %s291
        %s293 = sand.u32 %s163, 1
        %s294 = smul.addr %s293, 8
        %s295 = scalar_lea.vmem [#allocation9], %s294
        %297 = vst [vmem:[#allocation2] sm:$0xff] 0.0
        %v298 = vld [vmem:[%s259] sm:$0xff]
        %vm299 = vcmask 130048
        %300 = vst.msk [vmem:[#allocation2] sm:$0xff] %vm299, %v298
        %v301 = vld [vmem:[#allocation2] sm:$0xff]
        %v303 = vcombine.high %v301, %v301
        %v305 = vunpack.c.l.s4 1966171168
        %v306 = vunpack.c.0.s8 %v305
        %v307 = vlaneseq
        %v308 = vshrl.u32 %v307, 7
        %v309 = vsub.s32 %v306, %v308
        %v310 = vrot.slane %v301, %v309
        %v312 = vunpack.c.l.s4 1966171168
        %v313 = vunpack.c.0.s8 %v312
        %v314 = vlaneseq
        %v315 = vshrl.u32 %v314, 7
        %v316 = vsub.s32 %v313, %v315
        %v317 = vrot.slane %v303, %v316
        %v318 = vcombine.high %v310, %v310
        %v319 = vcombine.high %v317, %v317
        %v321 = vunpack.c.l.s4 1966171168
        %v322 = vunpack.c.0.s8 %v321
        %v323 = vlaneseq
        %v324 = vshrl.u32 %v323, 7
        %v325 = vsub.s32 %v322, %v324
        %v326 = vrot.slane %v310, %v325
        %v328 = vunpack.c.l.s4 1966171168
        %v329 = vunpack.c.0.s8 %v328
        %v330 = vlaneseq
        %v331 = vshrl.u32 %v330, 7
        %v332 = vsub.s32 %v329, %v331
        %v333 = vrot.slane %v317, %v332
        %v335 = vunpack.c.l.s4 1966171168
        %v336 = vunpack.c.0.s8 %v335
        %v337 = vlaneseq
        %v338 = vshrl.u32 %v337, 7
        %v339 = vsub.s32 %v336, %v338
        %v340 = vrot.slane %v318, %v339
        %v342 = vunpack.c.l.s4 1966171168
        %v343 = vunpack.c.0.s8 %v342
        %v344 = vlaneseq
        %v345 = vshrl.u32 %v344, 7
        %v346 = vsub.s32 %v343, %v345
        %v347 = vrot.slane %v319, %v346
        %v348 = vcombine.high %v326, %v326
        %v349 = vcombine.high %v333, %v333
        %v350 = vcombine.high %v340, %v340
        %v351 = vcombine.high %v347, %v347
        %v352 = vlaneseq
        %v353 = vshrl.u32 %v352, 7
        %v354 = vsub.s32 0, %v353
        %v355 = vrot.slane %v326, %v354
        %v356 = vlaneseq
        %v357 = vshrl.u32 %v356, 7
        %v358 = vsub.s32 0, %v357
        %v359 = vrot.slane %v340, %v358
        %v360 = vlaneseq
        %v361 = vshrl.u32 %v360, 7
        %v362 = vsub.s32 0, %v361
        %v363 = vrot.slane %v348, %v362
        %v364 = vlaneseq
        %v365 = vshrl.u32 %v364, 7
        %v366 = vsub.s32 0, %v365
        %v367 = vrot.slane %v350, %v366
        %v368 = vlaneseq
        %v369 = vshrl.u32 %v368, 7
        %v370 = vsub.s32 0, %v369
        %v371 = vrot.slane %v333, %v370
        %v372 = vlaneseq
        %v373 = vshrl.u32 %v372, 7
        %v374 = vsub.s32 0, %v373
        %v375 = vrot.slane %v347, %v374
        %v376 = vlaneseq
        %v377 = vshrl.u32 %v376, 7
        %v378 = vsub.s32 0, %v377
        %v379 = vrot.slane %v349, %v378
        %v380 = vlaneseq
        %v381 = vshrl.u32 %v380, 7
        %v382 = vsub.s32 0, %v381
        %v383 = vrot.slane %v351, %v382
        %v392 = vmul.f32 %v355, %v301
        %v393 = vmul.f32 %v359, %v301
        %v394 = vmul.f32 %v363, %v301
        %v395 = vmul.f32 %v367, %v301
        %v396 = vmul.f32 %v371, %v301
        %v397 = vmul.f32 %v375, %v301
        %v398 = vmul.f32 %v379, %v301
        %v399 = vmul.f32 %v383, %v301
        %v400 = vpack.c.bf16 %v393, %v392
        %v401 = vpack.c.bf16 %v395, %v394
        %v402 = vpack.c.bf16 %v397, %v396
        %v403 = vpack.c.bf16 %v399, %v398
        %v404 = vld [vmem:[#allocation6] sm:$0xf]
        %v405 = vld [vmem:[#allocation6 + $0x4] sm:$0xf]
        %v406 = vld [vmem:[#allocation6 + $0x8] sm:$0xf]
        %v407 = vld [vmem:[#allocation6 + $0xc] sm:$0xf]
        %v408 = vld [vmem:[#allocation6 + $0x10] sm:$0xf]
        %v409 = vld [vmem:[#allocation6 + $0x14] sm:$0xf]
        %v410 = vld [vmem:[#allocation6 + $0x18] sm:$0xf]
        %v411 = vld [vmem:[#allocation6 + $0x1c] sm:$0xf]
        %v412 = vld [vmem:[#allocation6 + $0x20] sm:$0xf]
        %v413 = vld [vmem:[#allocation6 + $0x24] sm:$0xf]
        %v414 = vld [vmem:[#allocation6 + $0x28] sm:$0xf]
        %v415 = vld [vmem:[#allocation6 + $0x2c] sm:$0xf]
        %v416 = vld [vmem:[#allocation6 + $0x30] sm:$0xf]
        %v417 = vld [vmem:[#allocation6 + $0x34] sm:$0xf]
        %v418 = vld [vmem:[#allocation6 + $0x38] sm:$0xf]
        %v419 = vld [vmem:[#allocation6 + $0x3c] sm:$0xf]
        %v420 = vld [vmem:[%s2] sm:$0x1]
        %v422 = vlaneseq
        %v423 = vshrl.u32 %v422, 7
        %v424 = vsub.s32 0, %v423
        %v425 = vrot.slane %v420, %v424
        %v443 = vunpack.c.l.b16 %v404
        %v444 = vunpack.c.l.b16 %v405
        %v445 = vunpack.c.l.b16 %v406
        %v446 = vunpack.c.l.b16 %v407
        %v447 = vunpack.c.l.b16 %v408
        %v448 = vunpack.c.l.b16 %v409
        %v449 = vunpack.c.l.b16 %v410
        %v450 = vunpack.c.l.b16 %v411
        %v451 = vunpack.c.l.b16 %v412
        %v452 = vunpack.c.l.b16 %v413
        %v453 = vunpack.c.l.b16 %v414
        %v454 = vunpack.c.l.b16 %v415
        %v455 = vunpack.c.l.b16 %v416
        %v456 = vunpack.c.l.b16 %v417
        %v457 = vunpack.c.l.b16 %v418
        %v458 = vunpack.c.l.b16 %v419
        %v459 = vpack.c.b16 %v444, %v443
        %v460 = vpack.c.b16 %v446, %v445
        %v461 = vpack.c.b16 %v448, %v447
        %v462 = vpack.c.b16 %v450, %v449
        %v463 = vpack.c.b16 %v452, %v451
        %v464 = vpack.c.b16 %v454, %v453
        %v465 = vpack.c.b16 %v456, %v455
        %v466 = vpack.c.b16 %v458, %v457
        %475 = vmatprep.subr.bf16.mxu0 0
        %476 = vmatpush1.bf16.msra.mxu0 %v466
        %477 = vmatprep.subr.bf16.mxu0 0
        %478 = vmatpush1.bf16.msra.mxu0 %v465
        %479 = vmatprep.subr.bf16.mxu0 0
        %480 = vmatpush1.bf16.msra.mxu0 %v464
        %481 = vmatprep.subr.bf16.mxu0 0
        %482 = vmatpush1.bf16.msra.mxu0 %v463
        %483 = vmatprep.subr.bf16.mxu0 0
        %484 = vmatpush1.bf16.msra.mxu0 %v462
        %485 = vmatprep.subr.bf16.mxu0 0
        %486 = vmatpush1.bf16.msra.mxu0 %v461
        %487 = vmatprep.subr.bf16.mxu0 0
        %488 = vmatpush1.bf16.msra.mxu0 %v460
        %489 = vmatprep.subr.bf16.mxu0 0
        %490 = vmatpush1.bf16.msra.mxu0 %v459
        %491 = vmatprep.subr.bf16.mxu0 0
        %492 = vmatpush2.bf16.msra.mxu0 0
        %493 = vmatprep.subr.bf16.mxu0 0
        %494 = vmatpush2.bf16.msra.mxu0 0
        %495 = vmatprep.subr.bf16.mxu0 0
        %496 = vmatpush2.bf16.msra.mxu0 0
        %497 = vmatprep.subr.bf16.mxu0 0
        %498 = vmatpush2.bf16.msra.mxu0 0
        %499 = vmatprep.subr.bf16.mxu0 0
        %500 = vmatpush2.bf16.msra.mxu0 0
        %501 = vmatprep.subr.bf16.mxu0 0
        %502 = vmatpush2.bf16.msra.mxu0 0
        %503 = vmatprep.subr.bf16.mxu0 0
        %504 = vmatpush2.bf16.msra.mxu0 0
        %505 = vmatprep.subr.bf16.mxu0 0
        %506 = vmatpush2.bf16.msra.mxu0 0
        %507 = vmatprep.mubr.bf16.mxu0 0
        %508 = vmatmul.mubr.bf16.gmra.mxu0 %v400
        %v509 = vpop.f32.mrf.mxu0
        %v510 = vadd.f32 %v425, %v509
        %v511 = vpop.f32.mrf.mxu0
        %v512 = vpop.f32.mrf.mxu0
        %v513 = vadd.f32 %v425, %v512
        %v514 = vpop.f32.mrf.mxu0
        %515 = vmatprep.mubr.bf16.mxu0 0
        %516 = vmatmul.mubr.bf16.gmra.mxu0 %v401
        %v517 = vpop.f32.mrf.mxu0
        %v518 = vadd.f32 %v425, %v517
        %v519 = vpop.f32.mrf.mxu0
        %v520 = vpop.f32.mrf.mxu0
        %v521 = vadd.f32 %v425, %v520
        %v522 = vpop.f32.mrf.mxu0
        %523 = vmatprep.mubr.bf16.mxu0 0
        %524 = vmatmul.mubr.bf16.gmra.mxu0 %v402
        %v525 = vpop.f32.mrf.mxu0
        %v526 = vadd.f32 %v425, %v525
        %v527 = vpop.f32.mrf.mxu0
        %v528 = vpop.f32.mrf.mxu0
        %v529 = vadd.f32 %v425, %v528
        %v530 = vpop.f32.mrf.mxu0
        %531 = vmatprep.mubr.bf16.mxu0 0
        %532 = vmatmul.mubr.bf16.gmra.mxu0 %v403
        %v533 = vpop.f32.mrf.mxu0
        %v534 = vadd.f32 %v425, %v533
        %v535 = vpop.f32.mrf.mxu0
        %v536 = vpop.f32.mrf.mxu0
        %v537 = vadd.f32 %v425, %v536
        %v538 = vpop.f32.mrf.mxu0
        %539 = vdwg.mxu0
        %v540 = vtanh.pop %v510
        %v541 = vtanh.pop %v513
        %v542 = vtanh.pop %v518
        %v543 = vtanh.pop %v521
        %v544 = vtanh.pop %v526
        %v545 = vtanh.pop %v529
        %v546 = vtanh.pop %v534
        %v547 = vtanh.pop %v537
        %v548 = vld [vmem:[%s3] sm:$0x1]
        %v550 = vlaneseq
        %v551 = vshrl.u32 %v550, 7
        %v552 = vsub.s32 0, %v551
        %v553 = vrot.slane %v548, %v552
        %v555 = vmul.f32 %v540, %v553
        %v556 = vmul.f32 %v541, %v553
        %v557 = vmul.f32 %v542, %v553
        %v558 = vmul.f32 %v543, %v553
        %v559 = vmul.f32 %v544, %v553
        %v560 = vmul.f32 %v545, %v553
        %v561 = vmul.f32 %v546, %v553
        %v562 = vmul.f32 %v547, %v553
        %563 = vadd.xlane.f32.xlu0 %v555
        %v564 = vpop.xlane.xlu0 %563
        %565 = vadd.xlane.f32.xlu0 %v556
        %v566 = vpop.xlane.xlu0 %565
        %567 = vadd.xlane.f32.xlu0 %v557
        %v568 = vpop.xlane.xlu0 %567
        %569 = vadd.xlane.f32.xlu0 %v558
        %v570 = vpop.xlane.xlu0 %569
        %571 = vadd.xlane.f32.xlu0 %v559
        %v572 = vpop.xlane.xlu0 %571
        %573 = vadd.xlane.f32.xlu0 %v560
        %v574 = vpop.xlane.xlu0 %573
        %575 = vadd.xlane.f32.xlu0 %v561
        %v576 = vpop.xlane.xlu0 %575
        %577 = vadd.xlane.f32.xlu0 %v562
        %v578 = vpop.xlane.xlu0 %577
        %v587 = vlaneseq
        %v588 = vand.u32 %v587, 127
        %v589 = vlaneseq
        %v590 = vshrl.u32 %v589, 7
        %v591 = vsub.s32 %v588, %v590
        %v592 = vrot.slane %v564, %v591
        %v593 = vlaneseq
        %v594 = vshrl.u32 %v593, 7
        %v595 = vsub.s32 %v588, %v594
        %v596 = vrot.slane %v566, %v595
        %v597 = vlaneseq
        %v598 = vshrl.u32 %v597, 7
        %v599 = vsub.s32 %v588, %v598
        %v600 = vrot.slane %v568, %v599
        %v601 = vlaneseq
        %v602 = vshrl.u32 %v601, 7
        %v603 = vsub.s32 %v588, %v602
        %v604 = vrot.slane %v570, %v603
        %v605 = vlaneseq
        %v606 = vshrl.u32 %v605, 7
        %v607 = vsub.s32 %v588, %v606
        %v608 = vrot.slane %v572, %v607
        %v609 = vlaneseq
        %v610 = vshrl.u32 %v609, 7
        %v611 = vsub.s32 %v588, %v610
        %v612 = vrot.slane %v574, %v611
        %v613 = vlaneseq
        %v614 = vshrl.u32 %v613, 7
        %v615 = vsub.s32 %v588, %v614
        %v616 = vrot.slane %v576, %v615
        %v617 = vlaneseq
        %v618 = vshrl.u32 %v617, 7
        %v619 = vsub.s32 %v588, %v618
        %v620 = vrot.slane %v578, %v619
        %vm621 = vcmask 1041409
        %v622 = vsel %vm621, %v596, %v592
        %vm623 = vcmask 1042434
        %v624 = vsel %vm623, %v600, %v622
        %vm625 = vcmask 1043459
        %v626 = vsel %vm625, %v604, %v624
        %vm627 = vcmask 1044484
        %v628 = vsel %vm627, %v608, %v626
        %vm629 = vcmask 1045509
        %v630 = vsel %vm629, %v612, %v628
        %vm631 = vcmask 1046534
        %v632 = vsel %vm631, %v616, %v630
        %vm633 = vcmask 1047559
        %v634 = vsel %vm633, %v620, %v632
        %vm636 = vcmask 64512
        %v637 = vsel %vm636, %v634, -inf
        %638 = vmax.xlane.f32.xlu0 %v637
        %v639 = vpop.xlane.xlu0 %638
        %v641 = vlaneseq
        %v642 = vshrl.u32 %v641, 7
        %v643 = vsub.s32 0, %v642
        %v644 = vrot.slane %v639, %v643
        %v645 = vlaneseq
        %v646 = vshrl.u32 %v645, 7
        %v647 = vsub.s32 1, %v646
        %v648 = vrot.slane %v639, %v647
        %v649 = vlaneseq
        %v650 = vshrl.u32 %v649, 7
        %v651 = vsub.s32 2, %v650
        %v652 = vrot.slane %v639, %v651
        %v653 = vlaneseq
        %v654 = vshrl.u32 %v653, 7
        %v655 = vsub.s32 3, %v654
        %v656 = vrot.slane %v639, %v655
        %v657 = vlaneseq
        %v658 = vshrl.u32 %v657, 7
        %v659 = vsub.s32 4, %v658
        %v660 = vrot.slane %v639, %v659
        %v661 = vlaneseq
        %v662 = vshrl.u32 %v661, 7
        %v663 = vsub.s32 5, %v662
        %v664 = vrot.slane %v639, %v663
        %v665 = vlaneseq
        %v666 = vshrl.u32 %v665, 7
        %v667 = vsub.s32 6, %v666
        %v668 = vrot.slane %v639, %v667
        %v669 = vlaneseq
        %v670 = vshrl.u32 %v669, 7
        %v671 = vsub.s32 7, %v670
        %v672 = vrot.slane %v639, %v671
        %v681 = vsub.f32 %v564, %v644
        %v682 = vsub.f32 %v566, %v648
        %v683 = vsub.f32 %v568, %v652
        %v684 = vsub.f32 %v570, %v656
        %v685 = vsub.f32 %v572, %v660
        %v686 = vsub.f32 %v574, %v664
        %v687 = vsub.f32 %v576, %v668
        %v688 = vsub.f32 %v578, %v672
        %v689 = vmul.f32 %v681, 1.442695
        %v690 = vpow.pop %v689
        %v691 = vmul.f32 %v682, 1.442695
        %v692 = vpow.pop %v691
        %v693 = vmul.f32 %v683, 1.442695
        %v694 = vpow.pop %v693
        %v695 = vmul.f32 %v684, 1.442695
        %v696 = vpow.pop %v695
        %v697 = vmul.f32 %v685, 1.442695
        %v698 = vpow.pop %v697
        %v699 = vmul.f32 %v686, 1.442695
        %v700 = vpow.pop %v699
        %v701 = vmul.f32 %v687, 1.442695
        %v702 = vpow.pop %v701
        %v703 = vmul.f32 %v688, 1.442695
        %v704 = vpow.pop %v703
        %713 = vset.pattern.permute.xlu0 0
        %714 = vperm.xlu0 %713, %v690
        %v715 = vpop.permute.xlu0 %714
        %716 = vset.pattern.permute.xlu0 0
        %717 = vperm.xlu0 %716, %v692
        %v718 = vpop.permute.xlu0 %717
        %719 = vset.pattern.permute.xlu0 0
        %720 = vperm.xlu0 %719, %v694
        %v721 = vpop.permute.xlu0 %720
        %722 = vset.pattern.permute.xlu0 0
        %723 = vperm.xlu0 %722, %v696
        %v724 = vpop.permute.xlu0 %723
        %725 = vset.pattern.permute.xlu0 0
        %726 = vperm.xlu0 %725, %v698
        %v727 = vpop.permute.xlu0 %726
        %728 = vset.pattern.permute.xlu0 0
        %729 = vperm.xlu0 %728, %v700
        %v730 = vpop.permute.xlu0 %729
        %731 = vset.pattern.permute.xlu0 0
        %732 = vperm.xlu0 %731, %v702
        %v733 = vpop.permute.xlu0 %732
        %734 = vset.pattern.permute.xlu0 0
        %735 = vperm.xlu0 %734, %v704
        %v736 = vpop.permute.xlu0 %735
        %v737 = vlaneseq
        %v738 = vshrl.u32 %v737, 7
        %v739 = vsub.s32 %v588, %v738
        %v740 = vrot.slane %v715, %v739
        %v741 = vlaneseq
        %v742 = vshrl.u32 %v741, 7
        %v743 = vsub.s32 %v588, %v742
        %v744 = vrot.slane %v718, %v743
        %v745 = vlaneseq
        %v746 = vshrl.u32 %v745, 7
        %v747 = vsub.s32 %v588, %v746
        %v748 = vrot.slane %v721, %v747
        %v749 = vlaneseq
        %v750 = vshrl.u32 %v749, 7
        %v751 = vsub.s32 %v588, %v750
        %v752 = vrot.slane %v724, %v751
        %v753 = vlaneseq
        %v754 = vshrl.u32 %v753, 7
        %v755 = vsub.s32 %v588, %v754
        %v756 = vrot.slane %v727, %v755
        %v757 = vlaneseq
        %v758 = vshrl.u32 %v757, 7
        %v759 = vsub.s32 %v588, %v758
        %v760 = vrot.slane %v730, %v759
        %v761 = vlaneseq
        %v762 = vshrl.u32 %v761, 7
        %v763 = vsub.s32 %v588, %v762
        %v764 = vrot.slane %v733, %v763
        %v765 = vlaneseq
        %v766 = vshrl.u32 %v765, 7
        %v767 = vsub.s32 %v588, %v766
        %v768 = vrot.slane %v736, %v767
        %v769 = vsel %vm621, %v744, %v740
        %v770 = vsel %vm623, %v748, %v769
        %v771 = vsel %vm625, %v752, %v770
        %v772 = vsel %vm627, %v756, %v771
        %v773 = vsel %vm629, %v760, %v772
        %v774 = vsel %vm631, %v764, %v773
        %v775 = vsel %vm633, %v768, %v774
        %v777 = vsel %vm636, %v775, 0.0
        %778 = vadd.xlane.f32.xlu0 %v777
        %v779 = vpop.xlane.xlu0 %778
        %v781 = vlaneseq
        %v782 = vshrl.u32 %v781, 7
        %v783 = vsub.s32 0, %v782
        %v784 = vrot.slane %v779, %v783
        %v785 = vlaneseq
        %v786 = vshrl.u32 %v785, 7
        %v787 = vsub.s32 1, %v786
        %v788 = vrot.slane %v779, %v787
        %v789 = vlaneseq
        %v790 = vshrl.u32 %v789, 7
        %v791 = vsub.s32 2, %v790
        %v792 = vrot.slane %v779, %v791
        %v793 = vlaneseq
        %v794 = vshrl.u32 %v793, 7
        %v795 = vsub.s32 3, %v794
        %v796 = vrot.slane %v779, %v795
        %v797 = vlaneseq
        %v798 = vshrl.u32 %v797, 7
        %v799 = vsub.s32 4, %v798
        %v800 = vrot.slane %v779, %v799
        %v801 = vlaneseq
        %v802 = vshrl.u32 %v801, 7
        %v803 = vsub.s32 5, %v802
        %v804 = vrot.slane %v779, %v803
        %v805 = vlaneseq
        %v806 = vshrl.u32 %v805, 7
        %v807 = vsub.s32 6, %v806
        %v808 = vrot.slane %v779, %v807
        %v809 = vlaneseq
        %v810 = vshrl.u32 %v809, 7
        %v811 = vsub.s32 7, %v810
        %v812 = vrot.slane %v779, %v811
        %v821 = vrcp.pop %v784
        %v822 = vmul.f32 %v690, %v821
        %v823 = vrcp.pop %v788
        %v824 = vmul.f32 %v692, %v823
        %v825 = vrcp.pop %v792
        %v826 = vmul.f32 %v694, %v825
        %v827 = vrcp.pop %v796
        %v828 = vmul.f32 %v696, %v827
        %v829 = vrcp.pop %v800
        %v830 = vmul.f32 %v698, %v829
        %v831 = vrcp.pop %v804
        %v832 = vmul.f32 %v700, %v831
        %v833 = vrcp.pop %v808
        %v834 = vmul.f32 %v702, %v833
        %v835 = vrcp.pop %v812
        %v836 = vmul.f32 %v704, %v835
        %838 = vset.pattern.permute.xlu0 0
        %839 = vperm.xlu0 %838, %v822
        %v840 = vpop.permute.xlu0 %839
        %843 = vset.pattern.permute.xlu0 0
        %844 = vperm.xlu0 %843, %v824
        %v845 = vpop.permute.xlu0 %844
        %848 = vset.pattern.permute.xlu0 0
        %849 = vperm.xlu0 %848, %v826
        %v850 = vpop.permute.xlu0 %849
        %853 = vset.pattern.permute.xlu0 0
        %854 = vperm.xlu0 %853, %v828
        %v855 = vpop.permute.xlu0 %854
        %858 = vset.pattern.permute.xlu0 0
        %859 = vperm.xlu0 %858, %v830
        %v860 = vpop.permute.xlu0 %859
        %863 = vset.pattern.permute.xlu0 0
        %864 = vperm.xlu0 %863, %v832
        %v865 = vpop.permute.xlu0 %864
        %868 = vset.pattern.permute.xlu0 0
        %869 = vperm.xlu0 %868, %v834
        %v870 = vpop.permute.xlu0 %869
        %873 = vset.pattern.permute.xlu0 0
        %874 = vperm.xlu0 %873, %v836
        %v875 = vpop.permute.xlu0 %874
        %v877 = vmul.f32 %v840, %v301
        %v878 = vmul.f32 %v845, %v301
        %v879 = vmul.f32 %v850, %v301
        %v880 = vmul.f32 %v855, %v301
        %v881 = vmul.f32 %v860, %v301
        %v882 = vmul.f32 %v865, %v301
        %v883 = vmul.f32 %v870, %v301
        %v884 = vmul.f32 %v875, %v301
        %v885 = vrot.slane %v877, 4
        %v886 = vadd.f32 %v877, %v885
        %v887 = vrot.slane %v886, 2
        %v888 = vadd.f32 %v886, %v887
        %v889 = vrot.slane %v888, 1
        %v890 = vadd.f32 %v888, %v889
        %v891 = vrot.slane %v878, 4
        %v892 = vadd.f32 %v878, %v891
        %v893 = vrot.slane %v892, 2
        %v894 = vadd.f32 %v892, %v893
        %v895 = vrot.slane %v894, 1
        %v896 = vadd.f32 %v894, %v895
        %v897 = vrot.slane %v879, 4
        %v898 = vadd.f32 %v879, %v897
        %v899 = vrot.slane %v898, 2
        %v900 = vadd.f32 %v898, %v899
        %v901 = vrot.slane %v900, 1
        %v902 = vadd.f32 %v900, %v901
        %v903 = vrot.slane %v880, 4
        %v904 = vadd.f32 %v880, %v903
        %v905 = vrot.slane %v904, 2
        %v906 = vadd.f32 %v904, %v905
        %v907 = vrot.slane %v906, 1
        %v908 = vadd.f32 %v906, %v907
        %v909 = vrot.slane %v881, 4
        %v910 = vadd.f32 %v881, %v909
        %v911 = vrot.slane %v910, 2
        %v912 = vadd.f32 %v910, %v911
        %v913 = vrot.slane %v912, 1
        %v914 = vadd.f32 %v912, %v913
        %v915 = vrot.slane %v882, 4
        %v916 = vadd.f32 %v882, %v915
        %v917 = vrot.slane %v916, 2
        %v918 = vadd.f32 %v916, %v917
        %v919 = vrot.slane %v918, 1
        %v920 = vadd.f32 %v918, %v919
        %v921 = vrot.slane %v883, 4
        %v922 = vadd.f32 %v883, %v921
        %v923 = vrot.slane %v922, 2
        %v924 = vadd.f32 %v922, %v923
        %v925 = vrot.slane %v924, 1
        %v926 = vadd.f32 %v924, %v925
        %v927 = vrot.slane %v884, 4
        %v928 = vadd.f32 %v884, %v927
        %v929 = vrot.slane %v928, 2
        %v930 = vadd.f32 %v928, %v929
        %v931 = vrot.slane %v930, 1
        %v932 = vadd.f32 %v930, %v931
        %v933 = vpack.c.bf16 %v890, %v890
        %v934 = vpack.c.bf16 %v896, %v896
        %v935 = vpack.c.bf16 %v902, %v902
        %v936 = vpack.c.bf16 %v908, %v908
        %v937 = vpack.c.bf16 %v914, %v914
        %v938 = vpack.c.bf16 %v920, %v920
        %v939 = vpack.c.bf16 %v926, %v926
        %v940 = vpack.c.bf16 %v932, %v932
        %v941 = vpack.c.bf16 %v301, %v301
        %v950 = vunpack.c.l.b16 %v933
        %v951 = vunpack.c.l.b16 %v934
        %v952 = vunpack.c.l.b16 %v935
        %v953 = vunpack.c.l.b16 %v936
        %v954 = vunpack.c.l.b16 %v937
        %v955 = vunpack.c.l.b16 %v938
        %v956 = vunpack.c.l.b16 %v939
        %v957 = vunpack.c.l.b16 %v940
        %v958 = vsel %vm621, %v951, %v950
        %v959 = vsel %vm623, %v952, %v958
        %v960 = vsel %vm625, %v953, %v959
        %v961 = vsel %vm627, %v954, %v960
        %v962 = vsel %vm629, %v955, %v961
        %v963 = vsel %vm631, %v956, %v962
        %v964 = vsel %vm633, %v957, %v963
        %v965 = vpack.c.b16 %v964, %v964
        %v967 = vld [vmem:[#allocation8] sm:$0xf]
        %v968 = vld [vmem:[#allocation8 + $0x4] sm:$0xf]
        %v969 = vld [vmem:[#allocation8 + $0x8] sm:$0xf]
        %v970 = vld [vmem:[#allocation8 + $0xc] sm:$0xf]
        %v971 = vld [vmem:[#allocation8 + $0x10] sm:$0xf]
        %v972 = vld [vmem:[#allocation8 + $0x14] sm:$0xf]
        %v973 = vld [vmem:[#allocation8 + $0x18] sm:$0xf]
        %v974 = vld [vmem:[#allocation8 + $0x1c] sm:$0xf]
        %v975 = vld [vmem:[#allocation8 + $0x20] sm:$0xf]
        %v976 = vld [vmem:[#allocation8 + $0x24] sm:$0xf]
        %v977 = vld [vmem:[#allocation8 + $0x28] sm:$0xf]
        %v978 = vld [vmem:[#allocation8 + $0x2c] sm:$0xf]
        %v979 = vld [vmem:[#allocation8 + $0x30] sm:$0xf]
        %v980 = vld [vmem:[#allocation8 + $0x34] sm:$0xf]
        %v981 = vld [vmem:[#allocation8 + $0x38] sm:$0xf]
        %v982 = vld [vmem:[#allocation8 + $0x3c] sm:$0xf]
        %v983 = vld [vmem:[#allocation8 + $0x40] sm:$0xf]
        %v984 = vld [vmem:[#allocation8 + $0x44] sm:$0xf]
        %v985 = vld [vmem:[#allocation8 + $0x48] sm:$0xf]
        %v986 = vld [vmem:[#allocation8 + $0x4c] sm:$0xf]
        %v987 = vld [vmem:[#allocation8 + $0x50] sm:$0xf]
        %v988 = vld [vmem:[#allocation8 + $0x54] sm:$0xf]
        %v989 = vld [vmem:[#allocation8 + $0x58] sm:$0xf]
        %v990 = vld [vmem:[#allocation8 + $0x5c] sm:$0xf]
        %v991 = vld [vmem:[#allocation8 + $0x60] sm:$0xf]
        %v992 = vld [vmem:[#allocation8 + $0x64] sm:$0xf]
        %v993 = vld [vmem:[#allocation8 + $0x68] sm:$0xf]
        %v994 = vld [vmem:[#allocation8 + $0x6c] sm:$0xf]
        %v995 = vld [vmem:[#allocation8 + $0x70] sm:$0xf]
        %v996 = vld [vmem:[#allocation8 + $0x74] sm:$0xf]
        %v997 = vld [vmem:[#allocation8 + $0x78] sm:$0xf]
        %v998 = vld [vmem:[#allocation8 + $0x7c] sm:$0xf]
        %v999 = vld [vmem:[%s5] sm:$0x1]
        %v1001 = vlaneseq
        %v1002 = vshrl.u32 %v1001, 7
        %v1003 = vsub.s32 0, %v1002
        %v1004 = vrot.slane %v999, %v1003
        %v1038 = vunpack.c.l.b16 %v967
        %v1039 = vunpack.c.l.b16 %v968
        %v1040 = vunpack.c.l.b16 %v969
        %v1041 = vunpack.c.l.b16 %v970
        %v1042 = vunpack.c.l.b16 %v971
        %v1043 = vunpack.c.l.b16 %v972
        %v1044 = vunpack.c.l.b16 %v973
        %v1045 = vunpack.c.l.b16 %v974
        %v1046 = vunpack.c.l.b16 %v975
        %v1047 = vunpack.c.l.b16 %v976
        %v1048 = vunpack.c.l.b16 %v977
        %v1049 = vunpack.c.l.b16 %v978
        %v1050 = vunpack.c.l.b16 %v979
        %v1051 = vunpack.c.l.b16 %v980
        %v1052 = vunpack.c.l.b16 %v981
        %v1053 = vunpack.c.l.b16 %v982
        %v1054 = vunpack.c.l.b16 %v983
        %v1055 = vunpack.c.l.b16 %v984
        %v1056 = vunpack.c.l.b16 %v985
        %v1057 = vunpack.c.l.b16 %v986
        %v1058 = vunpack.c.l.b16 %v987
        %v1059 = vunpack.c.l.b16 %v988
        %v1060 = vunpack.c.l.b16 %v989
        %v1061 = vunpack.c.l.b16 %v990
        %v1062 = vunpack.c.l.b16 %v991
        %v1063 = vunpack.c.l.b16 %v992
        %v1064 = vunpack.c.l.b16 %v993
        %v1065 = vunpack.c.l.b16 %v994
        %v1066 = vunpack.c.l.b16 %v995
        %v1067 = vunpack.c.l.b16 %v996
        %v1068 = vunpack.c.l.b16 %v997
        %v1069 = vunpack.c.l.b16 %v998
        %v1070 = vpack.c.b16 %v1039, %v1038
        %v1071 = vpack.c.b16 %v1041, %v1040
        %v1072 = vpack.c.b16 %v1043, %v1042
        %v1073 = vpack.c.b16 %v1045, %v1044
        %v1074 = vpack.c.b16 %v1047, %v1046
        %v1075 = vpack.c.b16 %v1049, %v1048
        %v1076 = vpack.c.b16 %v1051, %v1050
        %v1077 = vpack.c.b16 %v1053, %v1052
        %v1078 = vpack.c.b16 %v1055, %v1054
        %v1079 = vpack.c.b16 %v1057, %v1056
        %v1080 = vpack.c.b16 %v1059, %v1058
        %v1081 = vpack.c.b16 %v1061, %v1060
        %v1082 = vpack.c.b16 %v1063, %v1062
        %v1083 = vpack.c.b16 %v1065, %v1064
        %v1084 = vpack.c.b16 %v1067, %v1066
        %v1085 = vpack.c.b16 %v1069, %v1068
        %1102 = vmatprep.subr.bf16.mxu0 0
        %1103 = vmatpush1.bf16.msra.mxu0 %v1077
        %1104 = vmatprep.subr.bf16.mxu0 0
        %1105 = vmatpush1.bf16.msra.mxu0 %v1076
        %1106 = vmatprep.subr.bf16.mxu0 0
        %1107 = vmatpush1.bf16.msra.mxu0 %v1075
        %1108 = vmatprep.subr.bf16.mxu0 0
        %1109 = vmatpush1.bf16.msra.mxu0 %v1074
        %1110 = vmatprep.subr.bf16.mxu0 0
        %1111 = vmatpush1.bf16.msra.mxu0 %v1073
        %1112 = vmatprep.subr.bf16.mxu0 0
        %1113 = vmatpush1.bf16.msra.mxu0 %v1072
        %1114 = vmatprep.subr.bf16.mxu0 0
        %1115 = vmatpush1.bf16.msra.mxu0 %v1071
        %1116 = vmatprep.subr.bf16.mxu0 0
        %1117 = vmatpush1.bf16.msra.mxu0 %v1070
        %1118 = vmatprep.subr.bf16.mxu0 0
        %1119 = vmatpush2.bf16.msra.mxu0 %v1085
        %1120 = vmatprep.subr.bf16.mxu0 0
        %1121 = vmatpush2.bf16.msra.mxu0 %v1084
        %1122 = vmatprep.subr.bf16.mxu0 0
        %1123 = vmatpush2.bf16.msra.mxu0 %v1083
        %1124 = vmatprep.subr.bf16.mxu0 0
        %1125 = vmatpush2.bf16.msra.mxu0 %v1082
        %1126 = vmatprep.subr.bf16.mxu0 0
        %1127 = vmatpush2.bf16.msra.mxu0 %v1081
        %1128 = vmatprep.subr.bf16.mxu0 0
        %1129 = vmatpush2.bf16.msra.mxu0 %v1080
        %1130 = vmatprep.subr.bf16.mxu0 0
        %1131 = vmatpush2.bf16.msra.mxu0 %v1079
        %1132 = vmatprep.subr.bf16.mxu0 0
        %1133 = vmatpush2.bf16.msra.mxu0 %v1078
        %1134 = vmatprep.mubr.bf16.mxu0 %v941
        %1135 = vmatmul.mubr.bf16.gmra.mxu0 %v965
        %v1136 = vpop.f32.mrf.mxu0
        %v1137 = vadd.f32 %v1004, %v1136
        %v1138 = vpop.f32.mrf.mxu0
        %v1139 = vpop.f32.mrf.mxu0
        %v1140 = vpop.f32.mrf.mxu0
        %1141 = vdwg.mxu0
        %vm1142 = vcmp.gt.f32.partialorder %v1137, 0.0
        %v1143 = vmin.f32 %v1137, 0.0
        %v1144 = vmul.f32 %v1143, 1.442695
        %v1145 = vpow.pop %v1144
        %v1146 = vsub.f32 %v1145, 1.0
        %v1147 = vmul.f32 %v1146, 1.6732632
        %v1148 = vsel %vm1142, %v1137, %v1147
        %v1149 = vmul.f32 %v1148, 1.050701
        %1150 = vst [vmem:[%s295] sm:$0xff] %v1149
        %s1151 = sand.u32 %s163, 1
        %s1152 = scalar_lea.sflag [#allocation5], %s1151
        %s1153 = sand.u32 %s163, 1
        %s1154 = smul.addr %s1153, 8
        %s1155 = scalar_lea.vmem [#allocation9], %s1154
        // Predicated region
        $region57: #{tpu_custom_call.1} parent=43 // pred_check
          %p1156 = pneg %p173
        $region58: #{tpu_custom_call.1} parent=43 // pred_check_branch
          %1158 = sbr.rel (%p1156) target = $region60
        $region59: #{tpu_custom_call.1} parent=43 // pred_region
          %s1160 = ssub.s32 128, 128
          %1161 = vsyncadd %s1152, %s1160
          %s1162 = smul.addr %s24, 128
          %s1163 = scalar_lea.hbm %s6, %s1162
          %s1165 = sshll.u32 %s1155, 4
          %s1166 = int_to_ptr.vmem [resolvable:$true] %s1165
          %1168 = dma.vmem_to_hbm [thread:$0]  %s1166, 128, %s1163, %s1152
        $region60: #{tpu_custom_call.1} parent=43 // pred_fallthru
          _
      $region44: #{tpu_custom_call.1} parent=5 // pred_fallthru
        _
      %p1169 = scmp.le.s32.totalorder 2, %s19
      // Predicated region
      $region61: #{tpu_custom_call.1} parent=5 // pred_check
        %p1170 = pneg %p1169
      $region62: #{tpu_custom_call.1} parent=5 // pred_check_branch
        %1172 = sbr.rel (%p1170) target = $region64
      $region63: #{tpu_custom_call.1} parent=5 // pred_region
        %s1173 = ssub.s32 %s19, 2
        // Predicated region
        $region65: #{tpu_custom_call.1} parent=63 // pred_check
          %p1174 = pneg %p179
        $region66: #{tpu_custom_call.1} parent=63 // pred_check_branch
          %1176 = sbr.rel (%p1174) target = $region68
        $region67: #{tpu_custom_call.1} parent=63 // pred_region
          %s1177 = sand.u32 %s164, 1
          %s1178 = scalar_lea.sflag [#allocation5], %s1177
          %s1179 = sand.u32 %s164, 1
          %s1180 = smul.addr %s1179, 8
          %s1181 = scalar_lea.vmem [#allocation9], %s1180
          %1182 = dma.done %s1178, 128
        $region68: #{tpu_custom_call.1} parent=63 // pred_fallthru
          _
      $region64: #{tpu_custom_call.1} parent=5 // pred_fallthru
        _
    $region6: #{tpu_custom_call.1} parent=1 // loop_footer
      %s23 = sadd.s32 1, %s19
    $region7: #{tpu_custom_call.1} parent=1 // loop_footer_branch
      %18 = sbr.rel target = $region3
    $region8: #{tpu_custom_call.1} parent=1 // loop_exit
      _
    %1183 = vsyncpa [#allocation4], 1
    %s1184 = scalar_lea.sflag [#allocation4], 1
    %1185 = vsyncpa %s1184, 1
    %1186 = vsyncpa [#allocation7], 1
    %1187 = vsyncpa [#allocation5], 1
    %s1188 = scalar_lea.sflag [#allocation5], 1
    %1189 = vsyncpa %s1188, 1

</llo_original>
